<compile_context>
chip_gen: v7x
topology: tpu7x:2x2x1
jax: 0.10.0
libtpu: 0.0.40
codegen_flags: <defaults>
</compile_context>

<pallas_src>
import functools

import jax
import jax.numpy as jnp
import numpy as np
from jax import lax
from jax.experimental import pallas as pl
from jax.experimental.pallas import tpu as pltpu


# ----------------------------------------------------------------------------------
# Pass 1: fused 1x1-conv projections  proj = [Wb_pad ; Wc_pad ; gamma*Wd] @ x + bias
# ----------------------------------------------------------------------------------
def proj_kernel(w_ref,        # (Ctot, C)  bf16   fused weights
                bias_ref,     # (Ctot, 1)  f32    fused bias
                x_ref,        # (1, C, TN) f32    spatial tile of x
                b_ref,        # (1, Cip, TN) bf16
                c_ref,        # (1, Cip, TN) bf16
                d_ref,        # (1, C,  TN) bf16  (already scaled by gamma)
                *, cip):
    x = x_ref[0].astype(jnp.bfloat16)                                   # (C, TN)
    proj = jnp.dot(w_ref[...], x,
                   preferred_element_type=jnp.float32) + bias_ref[...]  # (Ctot, TN)
    # Split points are multiples of 16 -> bf16 sublane-aligned slabs.
    b_ref[0] = proj[:cip].astype(jnp.bfloat16)
    c_ref[0] = proj[cip:2 * cip].astype(jnp.bfloat16)
    d_ref[0] = proj[2 * cip:].astype(jnp.bfloat16)


# ----------------------------------------------------------------------------------
# Pass 2: flash-style attention + residual, key-major (TK, TQ) layout (no transposes)
# ----------------------------------------------------------------------------------
def attn_kernel(b_ref,        # (1, Cip, TK) bf16   keys
                c_ref,        # (1, Cip, TQ) bf16   queries
                d_ref,        # (1, C,  TK) bf16    values (gamma-scaled)
                xq_ref,       # (1, C,  TQ) f32     residual
                mask_ref,     # (TK, 1)     f32     0 for valid keys, -1e30 for padding
                out_ref,      # (1, C,  TQ) f32
                m_sc,         # (1, TQ) f32
                l_sc,         # (1, TQ) f32
                acc_sc):      # (C, TQ) f32
    ki = pl.program_id(2)

    @pl.when(ki == 0)
    def _():
        m_sc[...] = jnp.full_like(m_sc, -jnp.inf)
        l_sc[...] = jnp.zeros_like(l_sc)
        acc_sc[...] = jnp.zeros_like(acc_sc)

    bt = b_ref[0]                                                       # (Cip, TK)
    ct = c_ref[0]                                                       # (Cip, TQ)
    dt = d_ref[0]                                                       # (C,  TK)

    # s[j, i] = sum_k b[k, j] * c[k, i]  -> (TK, TQ); transposed-LHS contraction folded
    # into the MXU, result is key-major so all softmax stats live on the query lane axis.
    s = lax.dot_general(bt, ct, dimension_numbers=(((0,), (0,)), ((), ())),
                        preferred_element_type=jnp.float32)             # (TK, TQ)
    s = s + mask_ref[...]                                               # mask padded keys

    m_prev = m_sc[...]                                                  # (1, TQ)
    m_new = jnp.maximum(m_prev, jnp.max(s, axis=0, keepdims=True))      # (1, TQ)
    alpha = jnp.exp(m_prev - m_new)                                     # (1, TQ)
    p = jnp.exp(s - m_new)                                              # (TK, TQ) f32
    l_sc[...] = alpha * l_sc[...] + jnp.sum(p, axis=0, keepdims=True)
    # agg[ch, i] += sum_j d[ch, j] * p[j, i]  (bf16 operands, f32 accumulation)
    acc_sc[...] = alpha * acc_sc[...] + jnp.dot(dt, p.astype(jnp.bfloat16),
                                                preferred_element_type=jnp.float32)
    m_sc[...] = m_new

    @pl.when(ki == pl.num_programs(2) - 1)
    def _():
        inv_l = pl.reciprocal(l_sc[...], approx=True)                   # (1, TQ) EUP
        out_ref[0] = (acc_sc[...] * inv_l + xq_ref[0]).astype(out_ref.dtype)


# ----------------------------------------------------------------------------------
# Wrapper
# ----------------------------------------------------------------------------------
def _round_up(x, m):
    return ((x + m - 1) // m) * m


def _pick_tile(n, candidates=(512, 256, 128)):
    """Largest lane-dense tile dividing n; for tiny n use the full extent."""
    if n < 128:
        return n
    for t in candidates:
        if n % t == 0:
            return t
    return 128  # n is always a multiple of 128 here


def pam_forward(x_nchw, params, *, tq=None, tk=None):
    """x_nchw: (B, C, H, W) float32. Returns (B, C, H, W)."""
    B, C, H, W = x_nchw.shape
    N = H * W
    Ci = params["wb"].shape[0]                      # inter_channels
    Cip = max(16, _round_up(Ci, 16))                # bf16 sublane-packed, zero rows -> exact
    Ctot = 2 * Cip + C

    # Pad N to a lane multiple (padded keys are masked below, padded queries sliced off).
    N_pad = N if N < 128 else _round_up(N, 128)
    if tq is None:
        tq = _pick_tile(N_pad)
    if tk is None:
        tk = _pick_tile(N_pad)
    assert N_pad % tq == 0 and N_pad % tk == 0
    nq, nk = N_pad // tq, N_pad // tk

    # NCHW -> (B, C, N): reshape only, no HBM transpose.
    x_cn = x_nchw.reshape(B, C, N)
    if N_pad != N:
        x_cn = jnp.pad(x_cn, ((0, 0), (0, 0), (0, N_pad - N)))

    gamma = params["gamma"].reshape(()).astype(jnp.float32)

    # Fused projection weights; gamma folded into Wd/bd (exact: gamma*(attn@d) == attn@(gamma*d)).
    wb_p = jnp.zeros((Cip, C), jnp.float32).at[:Ci].set(params["wb"])
    wc_p = jnp.zeros((Cip, C), jnp.float32).at[:Ci].set(params["wc"])
    bb_p = jnp.zeros((Cip, 1), jnp.float32).at[:Ci, 0].set(params["bb"])
    bc_p = jnp.zeros((Cip, 1), jnp.float32).at[:Ci, 0].set(params["bc"])
    w_all = jnp.concatenate([wb_p, wc_p, gamma * params["wd"]], axis=0).astype(jnp.bfloat16)
    b_all = jnp.concatenate([bb_p, bc_p, (gamma * params["bd"]).reshape(C, 1)], axis=0)

    cp = pltpu.CompilerParams(
        dimension_semantics=("parallel", "parallel"),
        vmem_limit_bytes=48 * 1024 * 1024,
    )

    # ---- Pass 1: projections, computed once per batch element, stored bf16 ----
    tn = _pick_tile(N_pad, (1024, 512, 256, 128))
    b_proj, c_proj, d_proj = pl.pallas_call(
        functools.partial(proj_kernel, cip=Cip),
        out_shape=(jax.ShapeDtypeStruct((B, Cip, N_pad), jnp.bfloat16),
                   jax.ShapeDtypeStruct((B, Cip, N_pad), jnp.bfloat16),
                   jax.ShapeDtypeStruct((B, C, N_pad), jnp.bfloat16)),
        grid=(B, N_pad // tn),
        in_specs=[
            pl.BlockSpec((Ctot, C), lambda bi, ni: (0, 0)),             # fused weights
            pl.BlockSpec((Ctot, 1), lambda bi, ni: (0, 0)),             # fused bias
            pl.BlockSpec((1, C, tn), lambda bi, ni: (bi, 0, ni)),       # x spatial tile
        ],
        out_specs=[pl.BlockSpec((1, Cip, tn), lambda bi, ni: (bi, 0, ni)),
                   pl.BlockSpec((1, Cip, tn), lambda bi, ni: (bi, 0, ni)),
                   pl.BlockSpec((1, C, tn), lambda bi, ni: (bi, 0, ni))],
        compiler_params=cp,
    )(w_all, b_all, x_cn)

    # Additive key mask: 0 for valid positions, -1e30 for padded ones.
    key_idx = jnp.arange(N_pad, dtype=jnp.int32)
    mask = jnp.where(key_idx < N, 0.0, -1e30).astype(jnp.float32).reshape(N_pad, 1)

    # ---- Pass 2: flash-style attention over (B, nq, nk) + residual add ----
    out_cn = pl.pallas_call(
        attn_kernel,
        out_shape=jax.ShapeDtypeStruct((B, C, N_pad), x_cn.dtype),
        grid=(B, nq, nk),
        in_specs=[
            pl.BlockSpec((1, Cip, tk), lambda bi, qi, ki: (bi, 0, ki)),  # b keys
            pl.BlockSpec((1, Cip, tq), lambda bi, qi, ki: (bi, 0, qi)),  # c queries
            pl.BlockSpec((1, C, tk), lambda bi, qi, ki: (bi, 0, ki)),    # d values
            pl.BlockSpec((1, C, tq), lambda bi, qi, ki: (bi, 0, qi)),    # x residual tile
            pl.BlockSpec((tk, 1), lambda bi, qi, ki: (ki, 0)),           # key mask
        ],
        out_specs=pl.BlockSpec((1, C, tq), lambda bi, qi, ki: (bi, 0, qi)),
        scratch_shapes=[pltpu.VMEM((1, tq), jnp.float32),    # running max
                        pltpu.VMEM((1, tq), jnp.float32),    # running denom
                        pltpu.VMEM((C, tq), jnp.float32)],   # output accumulator
        compiler_params=pltpu.CompilerParams(
            dimension_semantics=("parallel", "parallel", "arbitrary"),
            vmem_limit_bytes=48 * 1024 * 1024,
        ),
    )(b_proj, c_proj, d_proj, x_cn, mask)

    if N_pad != N:
        out_cn = out_cn[:, :, :N]
    return out_cn.reshape(B, C, H, W)


# ----------------------------------------------------------------------------------
# Pure-JAX f32 reference mirroring the PyTorch forward exactly.
# ----------------------------------------------------------------------------------
def pam_reference(x_nchw, params):
    B, C, H, W = x_nchw.shape
    N = H * W
    x_cn = x_nchw.reshape(B, C, N)
    b = jnp.einsum("oc,bcn->bon", params["wb"], x_cn) + params["bb"][None, :, None]
    c = jnp.einsum("oc,bcn->bon", params["wc"], x_cn) + params["bc"][None, :, None]
    d = jnp.einsum("oc,bcn->bon", params["wd"], x_cn) + params["bd"][None, :, None]
    logits = jnp.einsum("bki,bkj->bij", c, b)                 # (B, N, N)
    attn = jax.nn.softmax(logits, axis=-1)
    agg = jnp.einsum("bij,bcj->bci", attn, d)                 # (B, C, N)
    out = params["gamma"][0] * agg + x_cn
    return out.reshape(B, C, H, W)


def init_params(key, in_channels, ratio=8):
    Ci = in_channels // ratio
    ks = jax.random.split(key, 6)
    # kaiming_normal_ (fan_out, relu): std = sqrt(2 / (out_ch * kh * kw)), kh = kw = 1
    wb = jax.random.normal(ks[0], (Ci, in_channels), jnp.float32) * np.sqrt(2.0 / Ci)
    wc = jax.random.normal(ks[1], (Ci, in_channels), jnp.float32) * np.sqrt(2.0 / Ci)
    wd = jax.random.normal(ks[2], (in_channels, in_channels), jnp.float32) * np.sqrt(2.0 / in_channels)
    # Conv2d default bias init: U(-1/sqrt(fan_in), 1/sqrt(fan_in))
    bnd = 1.0 / np.sqrt(in_channels)
    bb = jax.random.uniform(ks[3], (Ci,), jnp.float32, -bnd, bnd)
    bc = jax.random.uniform(ks[4], (Ci,), jnp.float32, -bnd, bnd)
    bd = jax.random.uniform(ks[5], (in_channels,), jnp.float32, -bnd, bnd)
    # PyTorch inits gamma to 0 (output would equal x); use 0.5 so the attention path
    # is actually exercised by the numeric check.
    gamma = jnp.asarray([0.5], jnp.float32)
    return {"wb": wb, "bb": bb, "wc": wc, "bc": bc, "wd": wd, "bd": bd, "gamma": gamma}


if __name__ == "__main__":
    key = jax.random.PRNGKey(0)
    kx1, kx2, kx3, kp = jax.random.split(key, 4)
    C = 32
    params = init_params(kp, C, ratio=8)

    # bf16 MXU operands + approx reciprocal -> compare against f32 reference loosely.
    tol = dict(rtol=3e-2, atol=3e-2)

    # Case 1: tiny shape, single tile (N = 64 < 128 -> full-extent blocks).
    x1 = 0.2 * jax.random.normal(kx1, (2, C, 8, 8), jnp.float32)
    out1 = jax.block_until_ready(pam_forward(x1, params))
    np.testing.assert_allclose(np.asarray(out1), np.asarray(pam_reference(x1, params)), **tol)

    # Case 2: multi-tile online-softmax path (N = 256, TQ = TK = 128 -> 2x2 tiles/batch).
    x2 = 0.2 * jax.random.normal(kx2, (2, C, 16, 16), jnp.float32)
    out2 = jax.block_until_ready(pam_forward(x2, params, tq=128, tk=128))
    np.testing.assert_allclose(np.asarray(out2), np.asarray(pam_reference(x2, params)), **tol)

    # Case 3: N not a multiple of 128 (N = 150 -> padded to 256, masked padded keys).
    x3 = 0.2 * jax.random.normal(kx3, (2, C, 10, 15), jnp.float32)
    out3 = jax.block_until_ready(pam_forward(x3, params, tq=128, tk=128))
    np.testing.assert_allclose(np.asarray(out3), np.asarray(pam_reference(x3, params)), **tol)

    print("KERNEL_OK")
</pallas_src>

<mosaic_0001>
module attributes {stable_mosaic.version = 11 : i64} {
  func.func @proj_kernel(%arg0: i32, %arg1: i32, %arg2: memref<64x32xbf16, #tpu.memory_space<vmem>>, %arg3: memref<64x1xf32, #tpu.memory_space<vmem>>, %arg4: memref<1x32x64xf32, #tpu.memory_space<vmem>>, %arg5: memref<1x16x64xbf16, #tpu.memory_space<vmem>>, %arg6: memref<1x16x64xbf16, #tpu.memory_space<vmem>>, %arg7: memref<1x32x64xbf16, #tpu.memory_space<vmem>>) attributes {dimension_semantics = [#tpu.dimension_semantics<parallel>, #tpu.dimension_semantics<parallel>], iteration_bounds = array<i64: 2, 1>, scalar_prefetch = 0 : i64, scratch_operands = 0 : i64, tpu.core_type = #tpu.core_type<tc>, window_params = [{pipeline_mode = #tpu.pipeline_mode<synchronous>, transform_indices = @transform_0, window_bounds = array<i64: 64, 32>}, {pipeline_mode = #tpu.pipeline_mode<synchronous>, transform_indices = @transform_1, window_bounds = array<i64: 64, 1>}, {transform_indices = @transform_2, window_bounds = array<i64: 1, 32, 64>}, {transform_indices = @transform_3, window_bounds = array<i64: 1, 16, 64>}, {transform_indices = @transform_4, window_bounds = array<i64: 1, 16, 64>}, {transform_indices = @transform_5, window_bounds = array<i64: 1, 32, 64>}]} {
    %c0 = arith.constant 0 : index
    %c0_0 = arith.constant 0 : index
    %c0_1 = arith.constant 0 : index
    %0 = vector.load %arg4[%c0, %c0_0, %c0_1] : memref<1x32x64xf32, #tpu.memory_space<vmem>>, vector<1x32x64xf32>
    %1 = vector.shape_cast %0 : vector<1x32x64xf32> to vector<32x64xf32>
    %2 = arith.truncf %1 : vector<32x64xf32> to vector<32x64xbf16>
    %c0_2 = arith.constant 0 : index
    %c0_3 = arith.constant 0 : index
    %3 = vector.load %arg2[%c0_2, %c0_3] : memref<64x32xbf16, #tpu.memory_space<vmem>>, vector<64x32xbf16>
    %cst = arith.constant dense<0.000000e+00> : vector<64x64xf32>
    %4 = tpu.matmul %3, %2, %cst {dimension_numbers = #tpu.dot_dimension_numbers<[1], [0], [0], [1], [0, 0, 1, 1], [], []>} : vector<64x32xbf16>, vector<32x64xbf16>, vector<64x64xf32> -> vector<64x64xf32>
    %c0_4 = arith.constant 0 : index
    %c0_5 = arith.constant 0 : index
    %5 = vector.load %arg3[%c0_4, %c0_5] : memref<64x1xf32, #tpu.memory_space<vmem>>, vector<64x1xf32>
    %6 = vector.broadcast %5 : vector<64x1xf32> to vector<64x64xf32>
    %7 = arith.addf %4, %6 : vector<64x64xf32>
    %8 = vector.extract_strided_slice %7 {offsets = [0, 0], sizes = [16, 64], strides = [1, 1]} : vector<64x64xf32> to vector<16x64xf32>
    %9 = arith.truncf %8 : vector<16x64xf32> to vector<16x64xbf16>
    %c0_6 = arith.constant 0 : index
    %c0_7 = arith.constant 0 : index
    %c0_8 = arith.constant 0 : index
    %10 = vector.load %arg5[%c0_6, %c0_7, %c0_8] : memref<1x16x64xbf16, #tpu.memory_space<vmem>>, vector<1x16x64xbf16>
    %11 = vector.shape_cast %10 : vector<1x16x64xbf16> to vector<16x64xbf16>
    %12 = vector.shape_cast %9 : vector<16x64xbf16> to vector<1x16x64xbf16>
    tpu.vector_store %arg5[%c0_6, %c0_7, %c0_8], %12 {strides = array<i32>} : memref<1x16x64xbf16, #tpu.memory_space<vmem>>, vector<1x16x64xbf16>,
    %13 = vector.extract_strided_slice %7 {offsets = [16, 0], sizes = [16, 64], strides = [1, 1]} : vector<64x64xf32> to vector<16x64xf32>
    %14 = arith.truncf %13 : vector<16x64xf32> to vector<16x64xbf16>
    %c0_9 = arith.constant 0 : index
    %c0_10 = arith.constant 0 : index
    %c0_11 = arith.constant 0 : index
    %15 = vector.load %arg6[%c0_9, %c0_10, %c0_11] : memref<1x16x64xbf16, #tpu.memory_space<vmem>>, vector<1x16x64xbf16>
    %16 = vector.shape_cast %15 : vector<1x16x64xbf16> to vector<16x64xbf16>
    %17 = vector.shape_cast %14 : vector<16x64xbf16> to vector<1x16x64xbf16>
    tpu.vector_store %arg6[%c0_9, %c0_10, %c0_11], %17 {strides = array<i32>} : memref<1x16x64xbf16, #tpu.memory_space<vmem>>, vector<1x16x64xbf16>,
    %18 = vector.extract_strided_slice %7 {offsets = [32, 0], sizes = [32, 64], strides = [1, 1]} : vector<64x64xf32> to vector<32x64xf32>
    %19 = arith.truncf %18 : vector<32x64xf32> to vector<32x64xbf16>
    %c0_12 = arith.constant 0 : index
    %c0_13 = arith.constant 0 : index
    %c0_14 = arith.constant 0 : index
    %20 = vector.load %arg7[%c0_12, %c0_13, %c0_14] : memref<1x32x64xbf16, #tpu.memory_space<vmem>>, vector<1x32x64xbf16>
    %21 = vector.shape_cast %20 : vector<1x32x64xbf16> to vector<32x64xbf16>
    %22 = vector.shape_cast %19 : vector<32x64xbf16> to vector<1x32x64xbf16>
    tpu.vector_store %arg7[%c0_12, %c0_13, %c0_14], %22 {strides = array<i32>} : memref<1x32x64xbf16, #tpu.memory_space<vmem>>, vector<1x32x64xbf16>,
    return
  }
  func.func @transform_0(%arg0: i32, %arg1: i32) -> (i32, i32) {
    %c0_i32 = arith.constant 0 : i32
    %c0_i32_0 = arith.constant 0 : i32
    %c0_i32_1 = arith.constant 0 : i32
    return %c0_i32, %c0_i32_0 : i32, i32
  }
  func.func @transform_1(%arg0: i32, %arg1: i32) -> (i32, i32) {
    %c0_i32 = arith.constant 0 : i32
    %c0_i32_0 = arith.constant 0 : i32
    %c0_i32_1 = arith.constant 0 : i32
    return %c0_i32, %c0_i32_0 : i32, i32
  }
  func.func @transform_2(%arg0: i32, %arg1: i32) -> (i32, i32, i32) {
    %c0_i32 = arith.constant 0 : i32
    %c0_i32_0 = arith.constant 0 : i32
    return %arg0, %c0_i32, %arg1 : i32, i32, i32
  }
  func.func @transform_3(%arg0: i32, %arg1: i32) -> (i32, i32, i32) {
    %c0_i32 = arith.constant 0 : i32
    %c0_i32_0 = arith.constant 0 : i32
    return %arg0, %c0_i32, %arg1 : i32, i32, i32
  }
  func.func @transform_4(%arg0: i32, %arg1: i32) -> (i32, i32, i32) {
    %c0_i32 = arith.constant 0 : i32
    %c0_i32_0 = arith.constant 0 : i32
    return %arg0, %c0_i32, %arg1 : i32, i32, i32
  }
  func.func @transform_5(%arg0: i32, %arg1: i32) -> (i32, i32, i32) {
    %c0_i32 = arith.constant 0 : i32
    %c0_i32_0 = arith.constant 0 : i32
    return %arg0, %c0_i32, %arg1 : i32, i32, i32
  }
}

</mosaic_0001>

<llo_original>
// kernel: tpu_custom_call.1
$region0: #{tpu_custom_call.1}
  #allocation0 [shape = 'u32[]', space=smem, size = 0x4, offset = 0x4, fixed_abs, tag = 'smem constant byte address 0x4 - core index']
  #allocation1 [shape = 'u32[144,128]{1,0:T(1,128)}', space=vmem, size = 0x12000, scoped, tag = 'internal scratch']
  %s0 = inlined_call_operand.vmem [shape: bf16[64,32], index: 0, kind: input, shape index: {}]
  %s1 = inlined_call_operand.vmem [shape: f32[64,1], index: 1, kind: input, shape index: {}]
  %s2 = inlined_call_operand.vmem [shape: f32[2,32,64], index: 2, kind: input, shape index: {}]
  %s3 = inlined_call_operand.hbm [shape: bf16[2,16,64], index: 3, kind: output, shape index: {0}]
  %s4 = inlined_call_operand.hbm [shape: bf16[2,16,64], index: 4, kind: output, shape index: {1}]
  %s5 = inlined_call_operand.hbm [shape: bf16[2,32,64], index: 5, kind: output, shape index: {2}]
  %6 = xla_tuple %s3, %s4, %s5
  %s7 = sld [smem:[#allocation0]]
  $region61: #{tpu_custom_call.1} parent=0
    _
  %s9 = ssub.s32 1, %s7
  %s10 = scalar_select 0, %s9, %s7
  $region1: #{tpu_custom_call.1} parent=0
    #allocation2 [shape = 'u8[8192]{0}', space=vmem, size = 0x2000, scoped, tag = 'output window, operand 0']
    #allocation3 [shape = 's32[2]{0}', space=sflag, size = 0x8, scoped, tag = 'scoped memory for tpu_custom_call.1']
    #allocation4 [shape = 'u8[8192]{0}', space=vmem, size = 0x2000, scoped, tag = 'output window, operand 1']
    #allocation5 [shape = 's32[2]{0}', space=sflag, size = 0x8, scoped, tag = 'scoped memory for tpu_custom_call.1']
    #allocation6 [shape = 'u8[16384]{0}', space=vmem, size = 0x4000, scoped, tag = 'output window, operand 2']
    %11 = vsyncpa [#allocation3], 0
    %s12 = scalar_lea.sflag [#allocation3], 1
    %13 = vsyncpa %s12, 0
    %14 = vsyncpa [#allocation5], 0
    %s15 = scalar_lea.sflag [#allocation5], 1
    %16 = vsyncpa %s15, 0
    loop: start=0, step=1, limit=4
    $region2: #{tpu_custom_call.1} parent=1 // loop_pre_header
      _
    $region3: #{tpu_custom_call.1} parent=1 // loop_header
      %s18 = sphi 0, %s22
      %p19 = scmp.ge.s32.totalorder %s18, 4
      %s25 = sphi 0, %s37
      %s26 = sphi 0, %s33
      %s27 = sphi 0, %s25
      %s28 = sphi 0, %s26
      %s29 = sphi 0, %s27
      %s30 = sphi 0, %s28
      %s38 = sphi 0, %s38
      %s40 = sphi 0, %s38
      %s41 = sphi 0, %s40
      %s55 = sphi 0, %s41
      %s59 = sphi 0, %s59
      %s61 = sphi 0, %s59
      %s62 = sphi 0, %s61
      %s76 = sphi 0, %s62
      %s84 = sphi 0, %s86
      %s87 = sphi 0, %s84
      %s88 = sphi 0, %s87
      %s104 = sphi 0, %s88
      %s112 = sphi 0, %s114
      %s115 = sphi 0, %s112
      %s116 = sphi 0, %s115
      %s132 = sphi 0, %s116
      %s140 = sphi 0, %s142
      %s143 = sphi 0, %s140
      %s144 = sphi 0, %s143
      %s160 = sphi 0, %s144
      %s168 = sphi 0, %s170
      %s171 = sphi 0, %s168
      %s172 = sphi 0, %s171
      %s188 = sphi 0, %s172
    $region4: #{tpu_custom_call.1} parent=1 // loop_header_branch
      %21 = sbr.rel (%p19) target = $region8
    $region5: #{tpu_custom_call.1} parent=1 // loop_body
      %s23 = ssub.s32 %s18, 1
      %s24 = ssub.s32 %s18, 2
      %s31 = sadd.s32 1, %s26
      %p32 = scmp.ge.s32.totalorder %s31, 1
      %s33 = scalar_select %p32, 0, %s31
      %s34 = sadd.s32 1, %s25
      %s35 = scalar_select %p32, %s34, %s25
      %p36 = scmp.ge.s32.totalorder %s35, 2
      %s37 = scalar_select %p36, 0, %s35
      %s39 = sadd.s32 %s38, 1
      %p42 = scmp.eq.s32.totalorder %s18, 1
      %p43 = scmp.ne.s32.totalorder %s38, %s40
      %p44 = scmp.eq.s32.totalorder %s18, 0
      %p45 = por %p43, %p44
      %p46 = scmp.ne.s32.totalorder %s38, %s40
      %p47 = scmp.eq.s32.totalorder %s23, 1
      %p48 = por %p46, %p47
      %p49 = scmp.ne.s32.totalorder %s40, %s41
      %p50 = scmp.eq.s32.totalorder %s23, 0
      %p51 = por %p49, %p50
      %p52 = scmp.ne.s32.totalorder %s40, %s41
      %p53 = scmp.eq.s32.totalorder %s24, 1
      %p54 = por %p52, %p53
      %p56 = scmp.ne.s32.totalorder %s41, %s55
      %p57 = scmp.eq.s32.totalorder %s24, 0
      %p58 = por %p56, %p57
      %s60 = sadd.s32 %s59, 1
      %p63 = scmp.eq.s32.totalorder %s18, 1
      %p64 = scmp.ne.s32.totalorder %s59, %s61
      %p65 = scmp.eq.s32.totalorder %s18, 0
      %p66 = por %p64, %p65
      %p67 = scmp.ne.s32.totalorder %s59, %s61
      %p68 = scmp.eq.s32.totalorder %s23, 1
      %p69 = por %p67, %p68
      %p70 = scmp.ne.s32.totalorder %s61, %s62
      %p71 = scmp.eq.s32.totalorder %s23, 0
      %p72 = por %p70, %p71
      %p73 = scmp.ne.s32.totalorder %s61, %s62
      %p74 = scmp.eq.s32.totalorder %s24, 1
      %p75 = por %p73, %p74
      %p77 = scmp.ne.s32.totalorder %s62, %s76
      %p78 = scmp.eq.s32.totalorder %s24, 0
      %p79 = por %p77, %p78
      %s80 = ssub.s32 %s25, %s37
      %s81 = ssub.s32 %s26, %s33
      %s82 = sor.u32 %s80, %s81
      %p83 = scmp.eq.s32.totalorder %s82, 0
      %s85 = sadd.s32 %s84, 1
      %s86 = scalar_select %p83, %s84, %s85
      %p89 = pneg %p83
      %p90 = scmp.eq.s32.totalorder %s18, 1
      %p91 = por %p89, %p90
      %p92 = scmp.ne.s32.totalorder %s84, %s87
      %p93 = scmp.eq.s32.totalorder %s18, 0
      %p94 = por %p92, %p93
      %p95 = scmp.ne.s32.totalorder %s84, %s87
      %p96 = scmp.eq.s32.totalorder %s23, 1
      %p97 = por %p95, %p96
      %p98 = scmp.ne.s32.totalorder %s87, %s88
      %p99 = scmp.eq.s32.totalorder %s23, 0
      %p100 = por %p98, %p99
      %p101 = scmp.ne.s32.totalorder %s87, %s88
      %p102 = scmp.eq.s32.totalorder %s24, 1
      %p103 = por %p101, %p102
      %p105 = scmp.ne.s32.totalorder %s88, %s104
      %p106 = scmp.eq.s32.totalorder %s24, 0
      %p107 = por %p105, %p106
      %s108 = ssub.s32 %s25, %s37
      %s109 = ssub.s32 %s26, %s33
      %s110 = sor.u32 %s108, %s109
      %p111 = scmp.eq.s32.totalorder %s110, 0
      %s113 = sadd.s32 %s112, 1
      %s114 = scalar_select %p111, %s112, %s113
      %p117 = pneg %p111
      %p118 = scmp.eq.s32.totalorder %s18, 1
      %p119 = por %p117, %p118
      %p120 = scmp.ne.s32.totalorder %s112, %s115
      %p121 = scmp.eq.s32.totalorder %s18, 0
      %p122 = por %p120, %p121
      %p123 = scmp.ne.s32.totalorder %s112, %s115
      %p124 = scmp.eq.s32.totalorder %s23, 1
      %p125 = por %p123, %p124
      %p126 = scmp.ne.s32.totalorder %s115, %s116
      %p127 = scmp.eq.s32.totalorder %s23, 0
      %p128 = por %p126, %p127
      %p129 = scmp.ne.s32.totalorder %s115, %s116
      %p130 = scmp.eq.s32.totalorder %s24, 1
      %p131 = por %p129, %p130
      %p133 = scmp.ne.s32.totalorder %s116, %s132
      %p134 = scmp.eq.s32.totalorder %s24, 0
      %p135 = por %p133, %p134
      %s136 = ssub.s32 %s25, %s37
      %s137 = ssub.s32 %s26, %s33
      %s138 = sor.u32 %s136, %s137
      %p139 = scmp.eq.s32.totalorder %s138, 0
      %s141 = sadd.s32 %s140, 1
      %s142 = scalar_select %p139, %s140, %s141
      %p145 = pneg %p139
      %p146 = scmp.eq.s32.totalorder %s18, 1
      %p147 = por %p145, %p146
      %p148 = scmp.ne.s32.totalorder %s140, %s143
      %p149 = scmp.eq.s32.totalorder %s18, 0
      %p150 = por %p148, %p149
      %p151 = scmp.ne.s32.totalorder %s140, %s143
      %p152 = scmp.eq.s32.totalorder %s23, 1
      %p153 = por %p151, %p152
      %p154 = scmp.ne.s32.totalorder %s143, %s144
      %p155 = scmp.eq.s32.totalorder %s23, 0
      %p156 = por %p154, %p155
      %p157 = scmp.ne.s32.totalorder %s143, %s144
      %p158 = scmp.eq.s32.totalorder %s24, 1
      %p159 = por %p157, %p158
      %p161 = scmp.ne.s32.totalorder %s144, %s160
      %p162 = scmp.eq.s32.totalorder %s24, 0
      %p163 = por %p161, %p162
      %s164 = ssub.s32 %s25, %s37
      %s165 = ssub.s32 %s26, %s33
      %s166 = sor.u32 %s164, %s165
      %p167 = scmp.eq.s32.totalorder %s166, 0
      %s169 = sadd.s32 %s168, 1
      %s170 = scalar_select %p167, %s168, %s169
      %p173 = pneg %p167
      %p174 = scmp.eq.s32.totalorder %s18, 1
      %p175 = por %p173, %p174
      %p176 = scmp.ne.s32.totalorder %s168, %s171
      %p177 = scmp.eq.s32.totalorder %s18, 0
      %p178 = por %p176, %p177
      %p179 = scmp.ne.s32.totalorder %s168, %s171
      %p180 = scmp.eq.s32.totalorder %s23, 1
      %p181 = por %p179, %p180
      %p182 = scmp.ne.s32.totalorder %s171, %s172
      %p183 = scmp.eq.s32.totalorder %s23, 0
      %p184 = por %p182, %p183
      %p185 = scmp.ne.s32.totalorder %s171, %s172
      %p186 = scmp.eq.s32.totalorder %s24, 1
      %p187 = por %p185, %p186
      %p189 = scmp.ne.s32.totalorder %s172, %s188
      %p190 = scmp.eq.s32.totalorder %s24, 0
      %p191 = por %p189, %p190
      %p192 = scmp.le.s32.totalorder 1, %s18
      %p193 = scmp.lt.s32.totalorder %s18, 3
      %p194 = pnand %p192, %p193
      %p195 = pneg %p194
      // Predicated region
      $region9: #{tpu_custom_call.1} parent=5 // pred_check
        _
      $region10: #{tpu_custom_call.1} parent=5 // pred_check_branch
        %197 = sbr.rel (%p194) target = $region12
      $region11: #{tpu_custom_call.1} parent=5 // pred_region
        %s198 = ssub.s32 %s18, 1
        // Predicated region
        $region13: #{tpu_custom_call.1} parent=11 // pred_check
          %p199 = pneg %p51
        $region14: #{tpu_custom_call.1} parent=11 // pred_check_branch
          %201 = sbr.rel (%p199) target = $region16
        $region15: #{tpu_custom_call.1} parent=11 // pred_region
          _
        $region16: #{tpu_custom_call.1} parent=11 // pred_fallthru
          _
        // Predicated region
        $region17: #{tpu_custom_call.1} parent=11 // pred_check
          %p202 = pneg %p72
        $region18: #{tpu_custom_call.1} parent=11 // pred_check_branch
          %204 = sbr.rel (%p202) target = $region20
        $region19: #{tpu_custom_call.1} parent=11 // pred_region
          _
        $region20: #{tpu_custom_call.1} parent=11 // pred_fallthru
          _
      $region12: #{tpu_custom_call.1} parent=5 // pred_fallthru
        _
      %p205 = scmp.lt.s32.totalorder %s18, 2
      // Predicated region
      $region21: #{tpu_custom_call.1} parent=5 // pred_check
        %p206 = pneg %p205
      $region22: #{tpu_custom_call.1} parent=5 // pred_check_branch
        %208 = sbr.rel (%p206) target = $region24
      $region23: #{tpu_custom_call.1} parent=5 // pred_region
        // Predicated region
        $region25: #{tpu_custom_call.1} parent=23 // pred_check
          %p209 = pneg %p94
        $region26: #{tpu_custom_call.1} parent=23 // pred_check_branch
          %211 = sbr.rel (%p209) target = $region28
        $region27: #{tpu_custom_call.1} parent=23 // pred_region
          %p212 = scmp.lt.s32.totalorder %s25, 1
          %s213 = scalar_select %p212, %s25, 1
          %p214 = scmp.lt.s32.totalorder %s26, 0
          %s215 = scalar_select %p214, %s26, 0
          %s216 = smul.addr %s213, 4
          %s217 = sadd.s32 %s215, %s216
          %s218 = smul.addr %s217, 8
          %s219 = scalar_lea.vmem %s2, %s218
        $region28: #{tpu_custom_call.1} parent=23 // pred_fallthru
          _
      $region24: #{tpu_custom_call.1} parent=5 // pred_fallthru
        _
      %p220 = scmp.le.s32.totalorder 1, %s18
      %p221 = scmp.lt.s32.totalorder %s18, 3
      %p222 = pnand %p220, %p221
      %p223 = pneg %p222
      // Predicated region
      $region29: #{tpu_custom_call.1} parent=5 // pred_check
        _
      $region30: #{tpu_custom_call.1} parent=5 // pred_check_branch
        %225 = sbr.rel (%p222) target = $region32
      $region31: #{tpu_custom_call.1} parent=5 // pred_region
        %s226 = ssub.s32 %s18, 1
        %p227 = pneg %p51
        %p228 = pneg %p48
        %p229 = pneg %p72
        %p230 = pneg %p69
        %p231 = scmp.lt.s32.totalorder %s27, 1
        %s232 = scalar_select %p231, %s27, 1
        %p233 = scmp.lt.s32.totalorder %s28, 0
        %s234 = scalar_select %p233, %s28, 0
        %s235 = smul.addr %s232, 4
        %s236 = sadd.s32 %s234, %s235
        %s237 = smul.addr %s236, 8
        %s238 = scalar_lea.vmem %s2, %s237
        %p239 = pneg %p100
        %p240 = pneg %p97
        %p241 = pneg %p128
        %p242 = pneg %p125
        %s243 = sand.u32 %s115, 1
        %s244 = scalar_lea.sflag [#allocation3], %s243
        %s245 = sand.u32 %s115, 1
        %s246 = smul.addr %s245, 8
        %s247 = scalar_lea.vmem [#allocation2], %s246
        %p248 = pneg %p156
        %p249 = pneg %p153
        %s250 = sand.u32 %s23, 1
        %s251 = scalar_lea.sflag [#allocation5], %s250
        %s252 = sand.u32 %s143, 1
        %s253 = smul.addr %s252, 8
        %s254 = scalar_lea.vmem [#allocation4], %s253
        %p255 = pneg %p184
        %p256 = pneg %p181
        %s257 = sand.u32 %s23, 1
        %s258 = scalar_lea.sflag [#allocation5], %s257
        %s259 = sand.u32 %s171, 1
        %s260 = smul.addr %s259, 16
        %s261 = scalar_lea.vmem [#allocation6], %s260
        %p262 = scmp.lt.s32.totalorder %s27, 1
        %s263 = scalar_select %p262, %s27, 1
        %p264 = scmp.lt.s32.totalorder %s28, 0
        %s265 = scalar_select %p264, %s28, 0
        %s266 = smul.addr %s263, 4
        %s267 = sadd.s32 %s265, %s266
        %s268 = smul.addr %s267, 8
        %s269 = scalar_lea.vmem %s2, %s268
        %v271 = vld [vmem:[%s269] sm:$0xff]
        %v272 = vld [vmem:[%s269 + $0x8] sm:$0xff]
        %v273 = vld [vmem:[%s269 + $0x10] sm:$0xff]
        %v274 = vld [vmem:[%s269 + $0x18] sm:$0xff]
        %v275 = vpack.c.bf16 %v272, %v271
        %v276 = vpack.c.bf16 %v274, %v273
        %v277 = vld [vmem:[%s0] sm:$0xf]
        %v278 = vld [vmem:[%s0 + $0x4] sm:$0xf]
        %v279 = vld [vmem:[%s0 + $0x8] sm:$0xf]
        %v280 = vld [vmem:[%s0 + $0xc] sm:$0xf]
        %v281 = vld [vmem:[%s0 + $0x10] sm:$0xf]
        %v282 = vld [vmem:[%s0 + $0x14] sm:$0xf]
        %v283 = vld [vmem:[%s0 + $0x18] sm:$0xf]
        %v284 = vld [vmem:[%s0 + $0x1c] sm:$0xf]
        %v285 = vld [vmem:[%s1] sm:$0xff]
        %v286 = vld [vmem:[%s1 + $0x8] sm:$0xff]
        %v287 = vld [vmem:[%s1 + $0x10] sm:$0xff]
        %v288 = vld [vmem:[%s1 + $0x18] sm:$0xff]
        %v289 = vld [vmem:[%s1 + $0x20] sm:$0xff]
        %v290 = vld [vmem:[%s1 + $0x28] sm:$0xff]
        %v291 = vld [vmem:[%s1 + $0x30] sm:$0xff]
        %v292 = vld [vmem:[%s1 + $0x38] sm:$0xff]
        %294 = vset.pattern.permute.xlu0 0
        %295 = vperm.xlu0 %294, %v285
        %v296 = vpop.permute.xlu0 %295
        %299 = vset.pattern.permute.xlu0 0
        %300 = vperm.xlu0 %299, %v286
        %v301 = vpop.permute.xlu0 %300
        %304 = vset.pattern.permute.xlu0 0
        %305 = vperm.xlu0 %304, %v287
        %v306 = vpop.permute.xlu0 %305
        %309 = vset.pattern.permute.xlu0 0
        %310 = vperm.xlu0 %309, %v288
        %v311 = vpop.permute.xlu0 %310
        %314 = vset.pattern.permute.xlu0 0
        %315 = vperm.xlu0 %314, %v289
        %v316 = vpop.permute.xlu0 %315
        %319 = vset.pattern.permute.xlu0 0
        %320 = vperm.xlu0 %319, %v290
        %v321 = vpop.permute.xlu0 %320
        %324 = vset.pattern.permute.xlu0 0
        %325 = vperm.xlu0 %324, %v291
        %v326 = vpop.permute.xlu0 %325
        %329 = vset.pattern.permute.xlu0 0
        %330 = vperm.xlu0 %329, %v292
        %v331 = vpop.permute.xlu0 %330
        %v341 = vunpack.c.l.b16 %v277
        %v342 = vunpack.c.l.b16 %v278
        %v343 = vunpack.c.l.b16 %v279
        %v344 = vunpack.c.l.b16 %v280
        %v345 = vunpack.c.l.b16 %v281
        %v346 = vunpack.c.l.b16 %v282
        %v347 = vunpack.c.l.b16 %v283
        %v348 = vunpack.c.l.b16 %v284
        %v349 = vpack.c.b16 %v342, %v341
        %v350 = vpack.c.b16 %v344, %v343
        %v351 = vpack.c.b16 %v346, %v345
        %v352 = vpack.c.b16 %v348, %v347
        %vm353 = vcmask 261120
        %v355 = vsel %vm353, %v349, 0
        %v358 = vsel %vm353, %v350, 0
        %v361 = vsel %vm353, %v351, 0
        %v364 = vsel %vm353, %v352, 0
        %366 = vmatprep.subr.bf16.mxu0 0
        %367 = vmatpush1.bf16.msra.mxu0 %v275
        %368 = vmatprep.subr.bf16.mxu0 0
        %369 = vmatpush1.bf16.msra.mxu0 %v276
        %370 = vmatprep.subr.bf16.mxu0 0
        %371 = vmatpush1.bf16.msra.mxu0 0
        %372 = vmatprep.subr.bf16.mxu0 0
        %373 = vmatpush1.bf16.msra.mxu0 0
        %374 = vmatprep.subr.bf16.mxu0 0
        %375 = vmatpush1.bf16.msra.mxu0 0
        %376 = vmatprep.subr.bf16.mxu0 0
        %377 = vmatpush1.bf16.msra.mxu0 0
        %378 = vmatprep.subr.bf16.mxu0 0
        %379 = vmatpush1.bf16.msra.mxu0 0
        %380 = vmatprep.subr.bf16.mxu0 0
        %381 = vmatpush1.bf16.msra.mxu0 0
        %382 = vmatprep.subr.bf16.mxu0 0
        %383 = vmatpush1.bf16.msra.mxu0 0
        %384 = vmatprep.subr.bf16.mxu0 0
        %385 = vmatpush1.bf16.msra.mxu0 0
        %386 = vmatprep.subr.bf16.mxu0 0
        %387 = vmatpush1.bf16.msra.mxu0 0
        %388 = vmatprep.subr.bf16.mxu0 0
        %389 = vmatpush1.bf16.msra.mxu0 0
        %390 = vmatprep.subr.bf16.mxu0 0
        %391 = vmatpush1.bf16.msra.mxu0 0
        %392 = vmatprep.subr.bf16.mxu0 0
        %393 = vmatpush1.bf16.msra.mxu0 0
        %394 = vmatprep.subr.bf16.mxu0 0
        %395 = vmatpush1.bf16.msra.mxu0 0
        %396 = vmatprep.subr.bf16.mxu0 0
        %397 = vmatpush1.bf16.msra.mxu0 0
        %398 = vmatprep.mubr.bf16.mxu0 0
        %399 = vmatmul.mubr.bf16.gmra.mrb[0].mxu0 %v355
        %v400 = vpop.f32.mrb[0].mxu0
        %v401 = vadd.f32 %v296, %v400
        %v402 = vpop.f32.mrb[0].mxu0
        %v403 = vpop.f32.mrb[0].mxu0
        %v404 = vadd.f32 %v301, %v403
        %v405 = vpop.f32.mrb[0].mxu0
        %406 = vmatprep.mubr.bf16.mxu0 0
        %407 = vmatmul.mubr.bf16.gmra.mrb[0].mxu0 %v358
        %v408 = vpop.f32.mrb[0].mxu0
        %v409 = vadd.f32 %v306, %v408
        %v410 = vpop.f32.mrb[0].mxu0
        %v411 = vpop.f32.mrb[0].mxu0
        %v412 = vadd.f32 %v311, %v411
        %v413 = vpop.f32.mrb[0].mxu0
        %414 = vmatprep.mubr.bf16.mxu0 0
        %415 = vmatmul.mubr.bf16.gmra.mrb[0].mxu0 %v361
        %v416 = vpop.f32.mrb[0].mxu0
        %v417 = vadd.f32 %v316, %v416
        %v418 = vpop.f32.mrb[0].mxu0
        %v419 = vpop.f32.mrb[0].mxu0
        %v420 = vadd.f32 %v321, %v419
        %v421 = vpop.f32.mrb[0].mxu0
        %422 = vmatprep.mubr.bf16.mxu0 0
        %423 = vmatmul.mubr.bf16.gmra.mrb[0].mxu0 %v364
        %v424 = vpop.f32.mrb[0].mxu0
        %v425 = vadd.f32 %v326, %v424
        %v426 = vpop.f32.mrb[0].mxu0
        %v427 = vpop.f32.mrb[0].mxu0
        %v428 = vadd.f32 %v331, %v427
        %v429 = vpop.f32.mrb[0].mxu0
        %430 = vdwg.mxu0
        %v431 = vpack.c.bf16 %v404, %v401
        %v433 = vunpack.c.l.b16 %v431
        %v434 = vunpack.c.h.b16 %v431
        %v435 = vpack.c.b16 %v433, %v433
        %v436 = vpack.c.b16 %v434, %v434
        %vm439 = vcmask 519168
        %440 = vst.msk [vmem:[%s247] sm:$0xf] %vm439, %v435
        %441 = vst.msk [vmem:[%s247 + $0x4] sm:$0xf] %vm439, %v436
        %v442 = vpack.c.bf16 %v412, %v409
        %v444 = vunpack.c.l.b16 %v442
        %v445 = vunpack.c.h.b16 %v442
        %v446 = vpack.c.b16 %v444, %v444
        %v447 = vpack.c.b16 %v445, %v445
        %450 = vst.msk [vmem:[%s254] sm:$0xf] %vm439, %v446
        %451 = vst.msk [vmem:[%s254 + $0x4] sm:$0xf] %vm439, %v447
        %v452 = vpack.c.bf16 %v420, %v417
        %v453 = vpack.c.bf16 %v428, %v425
        %v456 = vunpack.c.l.b16 %v452
        %v457 = vunpack.c.h.b16 %v452
        %v458 = vunpack.c.l.b16 %v453
        %v459 = vunpack.c.h.b16 %v453
        %v460 = vpack.c.b16 %v456, %v456
        %v461 = vpack.c.b16 %v457, %v457
        %v462 = vpack.c.b16 %v458, %v458
        %v463 = vpack.c.b16 %v459, %v459
        %468 = vst.msk [vmem:[%s261] sm:$0xf] %vm439, %v460
        %469 = vst.msk [vmem:[%s261 + $0x4] sm:$0xf] %vm439, %v461
        %470 = vst.msk [vmem:[%s261 + $0x8] sm:$0xf] %vm439, %v462
        %471 = vst.msk [vmem:[%s261 + $0xc] sm:$0xf] %vm439, %v463
        %s472 = sand.u32 %s115, 1
        %s473 = scalar_lea.sflag [#allocation3], %s472
        %s474 = sand.u32 %s115, 1
        %s475 = smul.addr %s474, 8
        %s476 = scalar_lea.vmem [#allocation2], %s475
        %s477 = sand.u32 %s23, 1
        %s478 = scalar_lea.sflag [#allocation5], %s477
        %s479 = sand.u32 %s143, 1
        %s480 = smul.addr %s479, 8
        %s481 = scalar_lea.vmem [#allocation4], %s480
        %s482 = sand.u32 %s23, 1
        %s483 = scalar_lea.sflag [#allocation5], %s482
        %s484 = sand.u32 %s171, 1
        %s485 = smul.addr %s484, 16
        %s486 = scalar_lea.vmem [#allocation6], %s485
        // Predicated region
        $region33: #{tpu_custom_call.1} parent=31 // pred_check
          %p487 = pneg %p125
        $region34: #{tpu_custom_call.1} parent=31 // pred_check_branch
          %489 = sbr.rel (%p487) target = $region36
        $region35: #{tpu_custom_call.1} parent=31 // pred_region
          %s491 = ssub.s32 128, 128
          %492 = vsyncadd %s473, %s491
          %s493 = smul.addr %s27, 2
          %s494 = sadd.s32 %s28, %s493
          %s495 = smul.addr %s494, 64
          %s496 = scalar_lea.hbm %s3, %s495
          %s497 = sshll.u32 %s476, 4
          %s498 = int_to_ptr.vmem [resolvable:$true] %s497
          %503 = dma.vmem_to_hbm [thread:$0]  %s498, 128, %s496, %s473, 64, 64, 4
        $region36: #{tpu_custom_call.1} parent=31 // pred_fallthru
          _
        // Predicated region
        $region37: #{tpu_custom_call.1} parent=31 // pred_check
          %p504 = pneg %p153
        $region38: #{tpu_custom_call.1} parent=31 // pred_check_branch
          %506 = sbr.rel (%p504) target = $region40
        $region39: #{tpu_custom_call.1} parent=31 // pred_region
          %s508 = ssub.s32 128, 128
          %509 = vsyncadd %s478, %s508
          %s510 = smul.addr %s27, 2
          %s511 = sadd.s32 %s28, %s510
          %s512 = smul.addr %s511, 64
          %s513 = scalar_lea.hbm %s4, %s512
          %s514 = sshll.u32 %s481, 4
          %s515 = int_to_ptr.vmem [resolvable:$true] %s514
          %520 = dma.vmem_to_hbm [thread:$0]  %s515, 128, %s513, %s478, 64, 64, 4
        $region40: #{tpu_custom_call.1} parent=31 // pred_fallthru
          _
        // Predicated region
        $region41: #{tpu_custom_call.1} parent=31 // pred_check
          %p521 = pneg %p181
        $region42: #{tpu_custom_call.1} parent=31 // pred_check_branch
          %523 = sbr.rel (%p521) target = $region44
        $region43: #{tpu_custom_call.1} parent=31 // pred_region
          %s525 = ssub.s32 256, 256
          %526 = vsyncadd %s483, %s525
          %s527 = smul.addr %s27, 4
          %s528 = sadd.s32 %s28, %s527
          %s529 = smul.addr %s528, 64
          %s530 = scalar_lea.hbm %s5, %s529
          %s531 = sshll.u32 %s486, 4
          %s532 = int_to_ptr.vmem [resolvable:$true] %s531
          %537 = dma.vmem_to_hbm [thread:$0]  %s532, 256, %s530, %s483, 64, 64, 4
        $region44: #{tpu_custom_call.1} parent=31 // pred_fallthru
          _
      $region32: #{tpu_custom_call.1} parent=5 // pred_fallthru
        _
      %p538 = scmp.le.s32.totalorder 2, %s18
      // Predicated region
      $region45: #{tpu_custom_call.1} parent=5 // pred_check
        %p539 = pneg %p538
      $region46: #{tpu_custom_call.1} parent=5 // pred_check_branch
        %541 = sbr.rel (%p539) target = $region48
      $region47: #{tpu_custom_call.1} parent=5 // pred_region
        %s542 = ssub.s32 %s18, 2
        // Predicated region
        $region49: #{tpu_custom_call.1} parent=47 // pred_check
          %p543 = pneg %p131
        $region50: #{tpu_custom_call.1} parent=47 // pred_check_branch
          %545 = sbr.rel (%p543) target = $region52
        $region51: #{tpu_custom_call.1} parent=47 // pred_region
          %s546 = sand.u32 %s116, 1
          %s547 = scalar_lea.sflag [#allocation3], %s546
          %s548 = sand.u32 %s116, 1
          %s549 = smul.addr %s548, 8
          %s550 = scalar_lea.vmem [#allocation2], %s549
          %551 = dma.done %s547, 128
        $region52: #{tpu_custom_call.1} parent=47 // pred_fallthru
          _
        // Predicated region
        $region53: #{tpu_custom_call.1} parent=47 // pred_check
          %p552 = pneg %p159
        $region54: #{tpu_custom_call.1} parent=47 // pred_check_branch
          %554 = sbr.rel (%p552) target = $region56
        $region55: #{tpu_custom_call.1} parent=47 // pred_region
          %s555 = sand.u32 %s24, 1
          %s556 = scalar_lea.sflag [#allocation5], %s555
          %s557 = sand.u32 %s144, 1
          %s558 = smul.addr %s557, 8
          %s559 = scalar_lea.vmem [#allocation4], %s558
          %560 = dma.done %s556, 128
        $region56: #{tpu_custom_call.1} parent=47 // pred_fallthru
          _
        // Predicated region
        $region57: #{tpu_custom_call.1} parent=47 // pred_check
          %p561 = pneg %p187
        $region58: #{tpu_custom_call.1} parent=47 // pred_check_branch
          %563 = sbr.rel (%p561) target = $region60
        $region59: #{tpu_custom_call.1} parent=47 // pred_region
          %s564 = sand.u32 %s24, 1
          %s565 = scalar_lea.sflag [#allocation5], %s564
          %s566 = sand.u32 %s172, 1
          %s567 = smul.addr %s566, 16
          %s568 = scalar_lea.vmem [#allocation6], %s567
          %569 = dma.done %s565, 256
        $region60: #{tpu_custom_call.1} parent=47 // pred_fallthru
          _
      $region48: #{tpu_custom_call.1} parent=5 // pred_fallthru
        _
    $region6: #{tpu_custom_call.1} parent=1 // loop_footer
      %s22 = sadd.s32 1, %s18
    $region7: #{tpu_custom_call.1} parent=1 // loop_footer_branch
      %17 = sbr.rel target = $region3
    $region8: #{tpu_custom_call.1} parent=1 // loop_exit
      _
    %570 = vsyncpa [#allocation3], 1
    %s571 = scalar_lea.sflag [#allocation3], 1
    %572 = vsyncpa %s571, 1
    %573 = vsyncpa [#allocation5], 1
    %s574 = scalar_lea.sflag [#allocation5], 1
    %575 = vsyncpa %s574, 1

</llo_original>
